<compile_context>
chip_gen: v7x
topology: tpu7x:2x2x1
jax: 0.10.0
libtpu: 0.0.40
codegen_flags: <defaults>
</compile_context>

<pallas_src>
import jax
import jax.numpy as jnp
from jax.experimental import pallas as pl
from jax.experimental.pallas import tpu as pltpu


def _yuv2rgb_kernel(w_ref, x_ref, o_ref):
    # w_ref: (3, 3) f32 in SMEM, row = output channel, col = input channel.
    # x_ref / o_ref: (1, 3, TH, TW) NCHW blocks (spatial dense on sublanes/lanes).
    y = x_ref[0, 0]
    u = x_ref[0, 1]
    v = x_ref[0, 2]
    for co in range(3):  # unrolled at trace time: 9 muls + 6 adds + 3 clips on the VPU
        acc = w_ref[co, 0] * y + w_ref[co, 1] * u + w_ref[co, 2] * v
        o_ref[0, co] = jnp.clip(acc, 0.0, 1.0).astype(o_ref.dtype)


def _sublane_unit(dtype):
    """Sublane tiling unit: 8 for f32, 16 for bf16, 32 for int8/fp8."""
    return max(8, 32 // jnp.dtype(dtype).itemsize)


def _pick_tile(dim, unit, cap):
    """Legal trailing-dim tile: the full dim (always legal) or a multiple of `unit`.

    A ragged final block (grid = cdiv) is handled by Pallas' boundary masking,
    which is safe here because the op is purely per-pixel.
    """
    if dim <= cap:
        return dim
    return max(unit, (cap // unit) * unit)


def conv2d_yuv_to_rgb(x, weight, *, target_pixels_per_block=393216):
    """x: (N, 3, H, W) float array ; weight: (3, 3, 1, 1) conv weight (C_out, C_in, 1, 1)."""
    n, c_in, h, w = x.shape
    c_out = weight.shape[0]
    assert c_in == 3 and c_out == 3 and weight.shape[2:] == (1, 1)

    sub_unit = _sublane_unit(x.dtype)

    # Lane (W) tile: full width when moderate (contiguous HBM runs, unmasked
    # vst everywhere), else a multiple of 128.  Sublane (H) tile sized so one
    # block is ~target pixels per channel (~4.5 MiB f32 for 3 channels).
    tw = _pick_tile(w, 128, 4096)
    th_cap = max(sub_unit, (target_pixels_per_block // tw) // sub_unit * sub_unit)
    th = _pick_tile(h, sub_unit, th_cap)

    # v7x has 2 TensorCores sharing the grid along parallel axes: make sure we
    # always have >= 2 steps by splitting H when the whole tensor fits one block.
    total_steps = n * pl.cdiv(h, th) * pl.cdiv(w, tw)
    if total_steps < 2:
        half_h = -(-h // 2)                                  # ceil(h/2)
        th_split = -(-half_h // sub_unit) * sub_unit          # round up to sublane unit
        if th_split < h:
            th = th_split

    grid = (n, pl.cdiv(h, th), pl.cdiv(w, tw))

    # 3x3 weight matrix as SMEM scalars (scalar prefetch).
    w_smem = weight.reshape(c_out, c_in).astype(jnp.float32)

    itemsize = jnp.dtype(x.dtype).itemsize
    cost = pl.CostEstimate(
        flops=15 * n * h * w,                     # 9 mul + 6 add per pixel
        transcendentals=0,
        bytes_accessed=2 * n * 3 * h * w * itemsize,
    )

    return pl.pallas_call(
        _yuv2rgb_kernel,
        out_shape=jax.ShapeDtypeStruct((n, c_out, h, w), x.dtype),
        grid_spec=pltpu.PrefetchScalarGridSpec(
            num_scalar_prefetch=1,
            grid=grid,
            in_specs=[
                pl.BlockSpec((1, c_in, th, tw), lambda b, i, j, _w: (b, 0, i, j)),
            ],
            out_specs=pl.BlockSpec((1, c_out, th, tw), lambda b, i, j, _w: (b, 0, i, j)),
        ),
        compiler_params=pltpu.CompilerParams(
            dimension_semantics=("parallel", "parallel", "parallel"),
            vmem_limit_bytes=48 << 20,  # ~18 MiB double-buffered blocks clear every gen
        ),
        cost_estimate=cost,
    )(w_smem, x)


if __name__ == "__main__":
    # Deterministic parameters (from the module's __init__).
    raw_weights = jnp.array(
        [[1.0, 0.0, 1.13983],
         [1.0, -0.39465, -0.5806],
         [1.0, 2.03211, 0.0]], dtype=jnp.float32).reshape(3, 3, 1, 1)
    w_mat = raw_weights.reshape(3, 3)

    key = jax.random.PRNGKey(0)

    # Small deterministic input: batch=2, channels=3 (YUV), spatial=16x16.
    x1 = jax.random.uniform(key, (2, 3, 16, 16), dtype=jnp.float32)
    out1 = jax.block_until_ready(conv2d_yuv_to_rgb(x1, raw_weights))
    ref1 = jnp.clip(jnp.einsum("nchw,oc->nohw", x1, w_mat), 0.0, 1.0)
    assert out1.shape == (2, 3, 16, 16)
    assert jnp.allclose(out1, ref1, atol=1e-5, rtol=1e-5)

    # Second case exercising the forced 2-way H split (single batch, one-block
    # image) and a 128-multiple lane width.
    x2 = jax.random.uniform(jax.random.PRNGKey(0), (1, 3, 16, 256), dtype=jnp.float32)
    out2 = jax.block_until_ready(conv2d_yuv_to_rgb(x2, raw_weights))
    ref2 = jnp.clip(jnp.einsum("nchw,oc->nohw", x2, w_mat), 0.0, 1.0)
    assert out2.shape == (1, 3, 16, 256)
    assert jnp.allclose(out2, ref2, atol=1e-5, rtol=1e-5)

    print("KERNEL_OK")
</pallas_src>

<mosaic_0001>
module attributes {stable_mosaic.version = 11 : i64} {
  func.func @_yuv2rgb_kernel(%arg0: i32, %arg1: i32, %arg2: i32, %arg3: memref<3x3xf32, #tpu.memory_space<smem>>, %arg4: memref<1x3x16x16xf32, #tpu.memory_space<vmem>>, %arg5: memref<1x3x16x16xf32, #tpu.memory_space<vmem>>) attributes {dimension_semantics = [#tpu.dimension_semantics<parallel>, #tpu.dimension_semantics<parallel>, #tpu.dimension_semantics<parallel>], iteration_bounds = array<i64: 2, 1, 1>, scalar_prefetch = 1 : i64, scratch_operands = 0 : i64, tpu.core_type = #tpu.core_type<tc>, window_params = [{transform_indices = @transform_0, window_bounds = array<i64: 1, 3, 16, 16>}, {transform_indices = @transform_1, window_bounds = array<i64: 1, 3, 16, 16>}]} {
    %c0 = arith.constant 0 : index
    %c0_0 = arith.constant 0 : index
    %c0_1 = arith.constant 0 : index
    %c0_2 = arith.constant 0 : index
    %0 = vector.load %arg4[%c0, %c0_0, %c0_1, %c0_2] : memref<1x3x16x16xf32, #tpu.memory_space<vmem>>, vector<1x1x16x16xf32>
    %1 = vector.shape_cast %0 : vector<1x1x16x16xf32> to vector<16x16xf32>
    %c0_3 = arith.constant 0 : index
    %c1 = arith.constant 1 : index
    %c0_4 = arith.constant 0 : index
    %c0_5 = arith.constant 0 : index
    %2 = vector.load %arg4[%c0_3, %c1, %c0_4, %c0_5] : memref<1x3x16x16xf32, #tpu.memory_space<vmem>>, vector<1x1x16x16xf32>
    %3 = vector.shape_cast %2 : vector<1x1x16x16xf32> to vector<16x16xf32>
    %c0_6 = arith.constant 0 : index
    %c2 = arith.constant 2 : index
    %c0_7 = arith.constant 0 : index
    %c0_8 = arith.constant 0 : index
    %4 = vector.load %arg4[%c0_6, %c2, %c0_7, %c0_8] : memref<1x3x16x16xf32, #tpu.memory_space<vmem>>, vector<1x1x16x16xf32>
    %5 = vector.shape_cast %4 : vector<1x1x16x16xf32> to vector<16x16xf32>
    %c0_9 = arith.constant 0 : index
    %c0_10 = arith.constant 0 : index
    %6 = memref.load %arg3[%c0_9, %c0_10] : memref<3x3xf32, #tpu.memory_space<smem>>
    %7 = vector.broadcast %6 : f32 to vector<16x16xf32>
    %8 = arith.mulf %7, %1 : vector<16x16xf32>
    %c0_11 = arith.constant 0 : index
    %c1_12 = arith.constant 1 : index
    %9 = memref.load %arg3[%c0_11, %c1_12] : memref<3x3xf32, #tpu.memory_space<smem>>
    %10 = vector.broadcast %9 : f32 to vector<16x16xf32>
    %11 = arith.mulf %10, %3 : vector<16x16xf32>
    %12 = arith.addf %8, %11 : vector<16x16xf32>
    %c0_13 = arith.constant 0 : index
    %c2_14 = arith.constant 2 : index
    %13 = memref.load %arg3[%c0_13, %c2_14] : memref<3x3xf32, #tpu.memory_space<smem>>
    %14 = vector.broadcast %13 : f32 to vector<16x16xf32>
    %15 = arith.mulf %14, %5 : vector<16x16xf32>
    %16 = arith.addf %12, %15 : vector<16x16xf32>
    %cst = arith.constant 0.000000e+00 : f32
    %cst_15 = arith.constant 1.000000e+00 : f32
    %17 = vector.broadcast %cst : f32 to vector<16x16xf32>
    %18 = arith.maximumf %17, %16 : vector<16x16xf32>
    %19 = vector.broadcast %cst_15 : f32 to vector<16x16xf32>
    %20 = arith.minimumf %19, %18 : vector<16x16xf32>
    %c0_16 = arith.constant 0 : index
    %c0_17 = arith.constant 0 : index
    %c0_18 = arith.constant 0 : index
    %c0_19 = arith.constant 0 : index
    %21 = vector.load %arg5[%c0_16, %c0_17, %c0_18, %c0_19] : memref<1x3x16x16xf32, #tpu.memory_space<vmem>>, vector<1x1x16x16xf32>
    %22 = vector.shape_cast %21 : vector<1x1x16x16xf32> to vector<16x16xf32>
    %23 = vector.shape_cast %20 : vector<16x16xf32> to vector<1x1x16x16xf32>
    tpu.vector_store %arg5[%c0_16, %c0_17, %c0_18, %c0_19], %23 {strides = array<i32>} : memref<1x3x16x16xf32, #tpu.memory_space<vmem>>, vector<1x1x16x16xf32>,
    %c1_20 = arith.constant 1 : index
    %c0_21 = arith.constant 0 : index
    %24 = memref.load %arg3[%c1_20, %c0_21] : memref<3x3xf32, #tpu.memory_space<smem>>
    %25 = vector.broadcast %24 : f32 to vector<16x16xf32>
    %26 = arith.mulf %25, %1 : vector<16x16xf32>
    %c1_22 = arith.constant 1 : index
    %c1_23 = arith.constant 1 : index
    %27 = memref.load %arg3[%c1_22, %c1_23] : memref<3x3xf32, #tpu.memory_space<smem>>
    %28 = vector.broadcast %27 : f32 to vector<16x16xf32>
    %29 = arith.mulf %28, %3 : vector<16x16xf32>
    %30 = arith.addf %26, %29 : vector<16x16xf32>
    %c1_24 = arith.constant 1 : index
    %c2_25 = arith.constant 2 : index
    %31 = memref.load %arg3[%c1_24, %c2_25] : memref<3x3xf32, #tpu.memory_space<smem>>
    %32 = vector.broadcast %31 : f32 to vector<16x16xf32>
    %33 = arith.mulf %32, %5 : vector<16x16xf32>
    %34 = arith.addf %30, %33 : vector<16x16xf32>
    %cst_26 = arith.constant 0.000000e+00 : f32
    %cst_27 = arith.constant 1.000000e+00 : f32
    %35 = vector.broadcast %cst_26 : f32 to vector<16x16xf32>
    %36 = arith.maximumf %35, %34 : vector<16x16xf32>
    %37 = vector.broadcast %cst_27 : f32 to vector<16x16xf32>
    %38 = arith.minimumf %37, %36 : vector<16x16xf32>
    %c0_28 = arith.constant 0 : index
    %c1_29 = arith.constant 1 : index
    %c0_30 = arith.constant 0 : index
    %c0_31 = arith.constant 0 : index
    %39 = vector.load %arg5[%c0_28, %c1_29, %c0_30, %c0_31] : memref<1x3x16x16xf32, #tpu.memory_space<vmem>>, vector<1x1x16x16xf32>
    %40 = vector.shape_cast %39 : vector<1x1x16x16xf32> to vector<16x16xf32>
    %41 = vector.shape_cast %38 : vector<16x16xf32> to vector<1x1x16x16xf32>
    tpu.vector_store %arg5[%c0_28, %c1_29, %c0_30, %c0_31], %41 {strides = array<i32>} : memref<1x3x16x16xf32, #tpu.memory_space<vmem>>, vector<1x1x16x16xf32>,
    %c2_32 = arith.constant 2 : index
    %c0_33 = arith.constant 0 : index
    %42 = memref.load %arg3[%c2_32, %c0_33] : memref<3x3xf32, #tpu.memory_space<smem>>
    %43 = vector.broadcast %42 : f32 to vector<16x16xf32>
    %44 = arith.mulf %43, %1 : vector<16x16xf32>
    %c2_34 = arith.constant 2 : index
    %c1_35 = arith.constant 1 : index
    %45 = memref.load %arg3[%c2_34, %c1_35] : memref<3x3xf32, #tpu.memory_space<smem>>
    %46 = vector.broadcast %45 : f32 to vector<16x16xf32>
    %47 = arith.mulf %46, %3 : vector<16x16xf32>
    %48 = arith.addf %44, %47 : vector<16x16xf32>
    %c2_36 = arith.constant 2 : index
    %c2_37 = arith.constant 2 : index
    %49 = memref.load %arg3[%c2_36, %c2_37] : memref<3x3xf32, #tpu.memory_space<smem>>
    %50 = vector.broadcast %49 : f32 to vector<16x16xf32>
    %51 = arith.mulf %50, %5 : vector<16x16xf32>
    %52 = arith.addf %48, %51 : vector<16x16xf32>
    %cst_38 = arith.constant 0.000000e+00 : f32
    %cst_39 = arith.constant 1.000000e+00 : f32
    %53 = vector.broadcast %cst_38 : f32 to vector<16x16xf32>
    %54 = arith.maximumf %53, %52 : vector<16x16xf32>
    %55 = vector.broadcast %cst_39 : f32 to vector<16x16xf32>
    %56 = arith.minimumf %55, %54 : vector<16x16xf32>
    %c0_40 = arith.constant 0 : index
    %c2_41 = arith.constant 2 : index
    %c0_42 = arith.constant 0 : index
    %c0_43 = arith.constant 0 : index
    %57 = vector.load %arg5[%c0_40, %c2_41, %c0_42, %c0_43] : memref<1x3x16x16xf32, #tpu.memory_space<vmem>>, vector<1x1x16x16xf32>
    %58 = vector.shape_cast %57 : vector<1x1x16x16xf32> to vector<16x16xf32>
    %59 = vector.shape_cast %56 : vector<16x16xf32> to vector<1x1x16x16xf32>
    tpu.vector_store %arg5[%c0_40, %c2_41, %c0_42, %c0_43], %59 {strides = array<i32>} : memref<1x3x16x16xf32, #tpu.memory_space<vmem>>, vector<1x1x16x16xf32>,
    return
  }
  func.func @transform_0(%arg0: i32, %arg1: i32, %arg2: i32, %arg3: memref<3x3xf32, #tpu.memory_space<smem>>) -> (i32, i32, i32, i32) {
    %c0_i32 = arith.constant 0 : i32
    %c0_i32_0 = arith.constant 0 : i32
    return %arg0, %c0_i32, %arg1, %arg2 : i32, i32, i32, i32
  }
  func.func @transform_1(%arg0: i32, %arg1: i32, %arg2: i32, %arg3: memref<3x3xf32, #tpu.memory_space<smem>>) -> (i32, i32, i32, i32) {
    %c0_i32 = arith.constant 0 : i32
    %c0_i32_0 = arith.constant 0 : i32
    return %arg0, %c0_i32, %arg1, %arg2 : i32, i32, i32, i32
  }
}

</mosaic_0001>

<llo_original>
// kernel: tpu_custom_call.1
$region0: #{tpu_custom_call.1}
  #allocation0 [shape = 'u32[]', space=smem, size = 0x4, offset = 0x4, fixed_abs, tag = 'smem constant byte address 0x4 - core index']
  #allocation1 [shape = 'u32[144,128]{1,0:T(1,128)}', space=vmem, size = 0x12000, scoped, tag = 'internal scratch']
  #allocation2 [shape = 's32[1]{0}', space=sflag, size = 0x4, scoped, tag = 'scoped memory for tpu_custom_call.1']
  #allocation3 [shape = 'u8[2048]{0}', space=smem, size = 0x800, scoped, tag = 'prefetched SMEM operand 0']
  %s0 = inlined_call_operand.hbm [shape: f32[3,3], index: 0, kind: input, shape index: {}]
  %s1 = inlined_call_operand.hbm [shape: f32[2,3,16,16], index: 1, kind: input, shape index: {}]
  %s2 = inlined_call_operand.hbm [shape: f32[2,3,16,16], index: 2, kind: output, shape index: {}]
  %s3 = sld [smem:[#allocation0]]
  $region41: #{tpu_custom_call.1} parent=0
    _
  %s5 = ssub.s32 1, %s3
  %s6 = scalar_select 0, %s5, %s3
  %8 = dma.hbm_to_smem %s0, 64, [#allocation3], [#allocation2]
  %9 = dma.done [#allocation2], 64
  %10 = sfence
  $region1: #{tpu_custom_call.1} parent=0
    #allocation4 [shape = 'u8[49152]{0}', space=vmem, size = 0xc000, scoped, tag = 'input window, operand 1']
    #allocation5 [shape = 's32[2]{0}', space=sflag, size = 0x8, scoped, tag = 'scoped memory for tpu_custom_call.1']
    #allocation6 [shape = 's32[2]{0}', space=sflag, size = 0x8, scoped, tag = 'scoped memory for tpu_custom_call.1']
    #allocation7 [shape = 'u8[49152]{0}', space=vmem, size = 0xc000, scoped, tag = 'output window, operand 0']
    %11 = vsyncpa [#allocation5], 0
    %s12 = scalar_lea.sflag [#allocation5], 1
    %13 = vsyncpa %s12, 0
    %14 = vsyncpa [#allocation6], 0
    %s15 = scalar_lea.sflag [#allocation6], 1
    %16 = vsyncpa %s15, 0
    loop: start=0, step=1, limit=4
    $region2: #{tpu_custom_call.1} parent=1 // loop_pre_header
      _
    $region3: #{tpu_custom_call.1} parent=1 // loop_header
      %s18 = sphi 0, %s22
      %p19 = scmp.ge.s32.totalorder %s18, 4
      %s25 = sphi 0, %s44
      %s26 = sphi 0, %s40
      %s27 = sphi 0, %s36
      %s28 = sphi 0, %s25
      %s29 = sphi 0, %s26
      %s30 = sphi 0, %s27
      %s31 = sphi 0, %s28
      %s32 = sphi 0, %s29
      %s33 = sphi 0, %s30
      %s51 = sphi 0, %s53
      %s54 = sphi 0, %s51
      %s55 = sphi 0, %s54
      %s71 = sphi 0, %s55
      %s81 = sphi 0, %s83
      %s84 = sphi 0, %s81
      %s85 = sphi 0, %s84
      %s101 = sphi 0, %s85
    $region4: #{tpu_custom_call.1} parent=1 // loop_header_branch
      %21 = sbr.rel (%p19) target = $region8
    $region5: #{tpu_custom_call.1} parent=1 // loop_body
      %s23 = ssub.s32 %s18, 1
      %s24 = ssub.s32 %s18, 2
      %s34 = sadd.s32 1, %s27
      %p35 = scmp.ge.s32.totalorder %s34, 1
      %s36 = scalar_select %p35, 0, %s34
      %s37 = sadd.s32 1, %s26
      %s38 = scalar_select %p35, %s37, %s26
      %p39 = scmp.ge.s32.totalorder %s38, 1
      %s40 = scalar_select %p39, 0, %s38
      %s41 = sadd.s32 1, %s25
      %s42 = scalar_select %p39, %s41, %s25
      %p43 = scmp.ge.s32.totalorder %s42, 2
      %s44 = scalar_select %p43, 0, %s42
      %s45 = ssub.s32 %s25, %s44
      %s46 = ssub.s32 %s26, %s40
      %s47 = sor.u32 %s45, %s46
      %s48 = ssub.s32 %s27, %s36
      %s49 = sor.u32 %s47, %s48
      %p50 = scmp.eq.s32.totalorder %s49, 0
      %s52 = sadd.s32 %s51, 1
      %s53 = scalar_select %p50, %s51, %s52
      %p56 = pneg %p50
      %p57 = scmp.eq.s32.totalorder %s18, 1
      %p58 = por %p56, %p57
      %p59 = scmp.ne.s32.totalorder %s51, %s54
      %p60 = scmp.eq.s32.totalorder %s18, 0
      %p61 = por %p59, %p60
      %p62 = scmp.ne.s32.totalorder %s51, %s54
      %p63 = scmp.eq.s32.totalorder %s23, 1
      %p64 = por %p62, %p63
      %p65 = scmp.ne.s32.totalorder %s54, %s55
      %p66 = scmp.eq.s32.totalorder %s23, 0
      %p67 = por %p65, %p66
      %p68 = scmp.ne.s32.totalorder %s54, %s55
      %p69 = scmp.eq.s32.totalorder %s24, 1
      %p70 = por %p68, %p69
      %p72 = scmp.ne.s32.totalorder %s55, %s71
      %p73 = scmp.eq.s32.totalorder %s24, 0
      %p74 = por %p72, %p73
      %s75 = ssub.s32 %s25, %s44
      %s76 = ssub.s32 %s26, %s40
      %s77 = sor.u32 %s75, %s76
      %s78 = ssub.s32 %s27, %s36
      %s79 = sor.u32 %s77, %s78
      %p80 = scmp.eq.s32.totalorder %s79, 0
      %s82 = sadd.s32 %s81, 1
      %s83 = scalar_select %p80, %s81, %s82
      %p86 = pneg %p80
      %p87 = scmp.eq.s32.totalorder %s18, 1
      %p88 = por %p86, %p87
      %p89 = scmp.ne.s32.totalorder %s81, %s84
      %p90 = scmp.eq.s32.totalorder %s18, 0
      %p91 = por %p89, %p90
      %p92 = scmp.ne.s32.totalorder %s81, %s84
      %p93 = scmp.eq.s32.totalorder %s23, 1
      %p94 = por %p92, %p93
      %p95 = scmp.ne.s32.totalorder %s84, %s85
      %p96 = scmp.eq.s32.totalorder %s23, 0
      %p97 = por %p95, %p96
      %p98 = scmp.ne.s32.totalorder %s84, %s85
      %p99 = scmp.eq.s32.totalorder %s24, 1
      %p100 = por %p98, %p99
      %p102 = scmp.ne.s32.totalorder %s85, %s101
      %p103 = scmp.eq.s32.totalorder %s24, 0
      %p104 = por %p102, %p103
      %p105 = scmp.le.s32.totalorder 1, %s18
      %p106 = scmp.lt.s32.totalorder %s18, 3
      %p107 = pnand %p105, %p106
      %p108 = pneg %p107
      // Predicated region
      $region9: #{tpu_custom_call.1} parent=5 // pred_check
        _
      $region10: #{tpu_custom_call.1} parent=5 // pred_check_branch
        %110 = sbr.rel (%p107) target = $region12
      $region11: #{tpu_custom_call.1} parent=5 // pred_region
        %s111 = ssub.s32 %s18, 1
      $region12: #{tpu_custom_call.1} parent=5 // pred_fallthru
        _
      %p112 = scmp.lt.s32.totalorder %s18, 2
      // Predicated region
      $region13: #{tpu_custom_call.1} parent=5 // pred_check
        %p113 = pneg %p112
      $region14: #{tpu_custom_call.1} parent=5 // pred_check_branch
        %115 = sbr.rel (%p113) target = $region16
      $region15: #{tpu_custom_call.1} parent=5 // pred_region
        // Predicated region
        $region17: #{tpu_custom_call.1} parent=15 // pred_check
          %p116 = pneg %p61
        $region18: #{tpu_custom_call.1} parent=15 // pred_check_branch
          %118 = sbr.rel (%p116) target = $region20
        $region19: #{tpu_custom_call.1} parent=15 // pred_region
          %s119 = sand.u32 %s51, 1
          %s120 = scalar_lea.sflag [#allocation5], %s119
          %s121 = sand.u32 %s51, 1
          %s122 = smul.addr %s121, 48
          %s123 = scalar_lea.vmem [#allocation4], %s122
          %s124 = smul.u32 2, %s26
          %s126 = ssub.s32 768, 768
          %127 = vsyncadd %s120, %s126
          %s128 = sadd.s32 %s27, %s124
          %s129 = smul.addr %s25, 6
          %s130 = sadd.s32 %s128, %s129
          %s131 = smul.addr %s130, 128
          %s132 = scalar_lea.hbm %s1, %s131
          %s133 = sshll.u32 %s123, 4
          %s134 = int_to_ptr.vmem [resolvable:$true] %s133
          %139 = dma.hbm_to_vmem [thread:$0]  %s132, 768, %s134, %s120, 128, 128, 8
        $region20: #{tpu_custom_call.1} parent=15 // pred_fallthru
          _
      $region16: #{tpu_custom_call.1} parent=5 // pred_fallthru
        _
      %p140 = scmp.le.s32.totalorder 1, %s18
      %p141 = scmp.lt.s32.totalorder %s18, 3
      %p142 = pnand %p140, %p141
      %p143 = pneg %p142
      // Predicated region
      $region21: #{tpu_custom_call.1} parent=5 // pred_check
        _
      $region22: #{tpu_custom_call.1} parent=5 // pred_check_branch
        %145 = sbr.rel (%p142) target = $region24
      $region23: #{tpu_custom_call.1} parent=5 // pred_region
        %s146 = ssub.s32 %s18, 1
        %s147 = sand.u32 %s54, 1
        %s148 = scalar_lea.sflag [#allocation5], %s147
        %s149 = sand.u32 %s54, 1
        %s150 = smul.addr %s149, 48
        %s151 = scalar_lea.vmem [#allocation4], %s150
        // Predicated region
        $region25: #{tpu_custom_call.1} parent=23 // pred_check
          %p152 = pneg %p67
        $region26: #{tpu_custom_call.1} parent=23 // pred_check_branch
          %154 = sbr.rel (%p152) target = $region28
        $region27: #{tpu_custom_call.1} parent=23 // pred_region
          %155 = dma.done %s148, 768
        $region28: #{tpu_custom_call.1} parent=23 // pred_fallthru
          _
        %s156 = sand.u32 %s54, 1
        %s157 = scalar_lea.sflag [#allocation5], %s156
        %s158 = sand.u32 %s54, 1
        %s159 = smul.addr %s158, 48
        %s160 = scalar_lea.vmem [#allocation4], %s159
        %p161 = pneg %p67
        %p162 = pneg %p64
        %p163 = pneg %p97
        %p164 = pneg %p94
        %s165 = sand.u32 %s84, 1
        %s166 = scalar_lea.sflag [#allocation6], %s165
        %s167 = sand.u32 %s84, 1
        %s168 = smul.addr %s167, 48
        %s169 = scalar_lea.vmem [#allocation7], %s168
        %s170 = smul.u32 2, %s29
        %s171 = smul.u32 2, %s29
        %v172 = vld [vmem:[%s151] sm:$0xff]
        %v173 = vld [vmem:[%s151 + $0x8] sm:$0xff]
        %s174 = scalar_lea.vmem %s151, 16 [#allocation4]
        %v175 = vld [vmem:[%s174] sm:$0xff]
        %v176 = vld [vmem:[%s174 + $0x8] sm:$0xff]
        %s177 = scalar_lea.vmem %s151, 32 [#allocation4]
        %v178 = vld [vmem:[%s177] sm:$0xff]
        %v179 = vld [vmem:[%s177 + $0x8] sm:$0xff]
        %s180 = sld [smem:[#allocation3]]
        %v181 = vstv %s180
        %v182 = vmul.f32 %v181, %v172
        %v183 = vmul.f32 %v181, %v173
        %s184 = sld [smem:[#allocation3 + $0x1]]
        %v185 = vstv %s184
        %v186 = vmul.f32 %v185, %v175
        %v187 = vmul.f32 %v185, %v176
        %v188 = vadd.f32 %v182, %v186
        %v189 = vadd.f32 %v183, %v187
        %s190 = sld [smem:[#allocation3 + $0x2]]
        %v191 = vstv %s190
        %v192 = vmul.f32 %v191, %v178
        %v193 = vmul.f32 %v191, %v179
        %v194 = vadd.f32 %v188, %v192
        %v195 = vadd.f32 %v189, %v193
        %v196 = vmax.f32 %v194, 0.0
        %v197 = vmax.f32 %v195, 0.0
        %v198 = vmin.f32 %v196, 1.0
        %v199 = vmin.f32 %v197, 1.0
        %vm200 = vcmask 130048
        %201 = vst.msk [vmem:[%s169] sm:$0xff] %vm200, %v198
        %202 = vst.msk [vmem:[%s169 + $0x8] sm:$0xff] %vm200, %v199
        %s203 = sld [smem:[#allocation3 + $0x80]]
        %v204 = vstv %s203
        %v205 = vmul.f32 %v204, %v172
        %v206 = vmul.f32 %v204, %v173
        %s207 = sld [smem:[#allocation3 + $0x81]]
        %v208 = vstv %s207
        %v209 = vmul.f32 %v208, %v175
        %v210 = vmul.f32 %v208, %v176
        %v211 = vadd.f32 %v205, %v209
        %v212 = vadd.f32 %v206, %v210
        %s213 = sld [smem:[#allocation3 + $0x82]]
        %v214 = vstv %s213
        %v215 = vmul.f32 %v214, %v178
        %v216 = vmul.f32 %v214, %v179
        %v217 = vadd.f32 %v211, %v215
        %v218 = vadd.f32 %v212, %v216
        %v219 = vmax.f32 %v217, 0.0
        %v220 = vmax.f32 %v218, 0.0
        %v221 = vmin.f32 %v219, 1.0
        %v222 = vmin.f32 %v220, 1.0
        %s223 = scalar_lea.vmem %s169, 16 [#allocation7]
        %224 = vst.msk [vmem:[%s223] sm:$0xff] %vm200, %v221
        %225 = vst.msk [vmem:[%s223 + $0x8] sm:$0xff] %vm200, %v222
        %s226 = sld [smem:[#allocation3 + $0x100]]
        %v227 = vstv %s226
        %v228 = vmul.f32 %v227, %v172
        %v229 = vmul.f32 %v227, %v173
        %s230 = sld [smem:[#allocation3 + $0x101]]
        %v231 = vstv %s230
        %v232 = vmul.f32 %v231, %v175
        %v233 = vmul.f32 %v231, %v176
        %v234 = vadd.f32 %v228, %v232
        %v235 = vadd.f32 %v229, %v233
        %s236 = sld [smem:[#allocation3 + $0x102]]
        %v237 = vstv %s236
        %v238 = vmul.f32 %v237, %v178
        %v239 = vmul.f32 %v237, %v179
        %v240 = vadd.f32 %v234, %v238
        %v241 = vadd.f32 %v235, %v239
        %v242 = vmax.f32 %v240, 0.0
        %v243 = vmax.f32 %v241, 0.0
        %v244 = vmin.f32 %v242, 1.0
        %v245 = vmin.f32 %v243, 1.0
        %s246 = scalar_lea.vmem %s169, 32 [#allocation7]
        %247 = vst.msk [vmem:[%s246] sm:$0xff] %vm200, %v244
        %248 = vst.msk [vmem:[%s246 + $0x8] sm:$0xff] %vm200, %v245
        %s249 = sand.u32 %s84, 1
        %s250 = scalar_lea.sflag [#allocation6], %s249
        %s251 = sand.u32 %s84, 1
        %s252 = smul.addr %s251, 48
        %s253 = scalar_lea.vmem [#allocation7], %s252
        // Predicated region
        $region29: #{tpu_custom_call.1} parent=23 // pred_check
          %p254 = pneg %p94
        $region30: #{tpu_custom_call.1} parent=23 // pred_check_branch
          %256 = sbr.rel (%p254) target = $region32
        $region31: #{tpu_custom_call.1} parent=23 // pred_region
          %s257 = smul.u32 2, %s29
          %s259 = ssub.s32 768, 768
          %260 = vsyncadd %s250, %s259
          %s261 = sadd.s32 %s30, %s257
          %s262 = smul.addr %s28, 6
          %s263 = sadd.s32 %s261, %s262
          %s264 = smul.addr %s263, 128
          %s265 = scalar_lea.hbm %s2, %s264
          %s266 = sshll.u32 %s253, 4
          %s267 = int_to_ptr.vmem [resolvable:$true] %s266
          %272 = dma.vmem_to_hbm [thread:$0]  %s267, 768, %s265, %s250, 128, 128, 8
        $region32: #{tpu_custom_call.1} parent=23 // pred_fallthru
          _
      $region24: #{tpu_custom_call.1} parent=5 // pred_fallthru
        _
      %p273 = scmp.le.s32.totalorder 2, %s18
      // Predicated region
      $region33: #{tpu_custom_call.1} parent=5 // pred_check
        %p274 = pneg %p273
      $region34: #{tpu_custom_call.1} parent=5 // pred_check_branch
        %276 = sbr.rel (%p274) target = $region36
      $region35: #{tpu_custom_call.1} parent=5 // pred_region
        %s277 = ssub.s32 %s18, 2
        // Predicated region
        $region37: #{tpu_custom_call.1} parent=35 // pred_check
          %p278 = pneg %p100
        $region38: #{tpu_custom_call.1} parent=35 // pred_check_branch
          %280 = sbr.rel (%p278) target = $region40
        $region39: #{tpu_custom_call.1} parent=35 // pred_region
          %s281 = sand.u32 %s85, 1
          %s282 = scalar_lea.sflag [#allocation6], %s281
          %s283 = sand.u32 %s85, 1
          %s284 = smul.addr %s283, 48
          %s285 = scalar_lea.vmem [#allocation7], %s284
          %286 = dma.done %s282, 768
        $region40: #{tpu_custom_call.1} parent=35 // pred_fallthru
          _
      $region36: #{tpu_custom_call.1} parent=5 // pred_fallthru
        _
    $region6: #{tpu_custom_call.1} parent=1 // loop_footer
      %s22 = sadd.s32 1, %s18
    $region7: #{tpu_custom_call.1} parent=1 // loop_footer_branch
      %17 = sbr.rel target = $region3
    $region8: #{tpu_custom_call.1} parent=1 // loop_exit
      _
    %287 = vsyncpa [#allocation5], 1
    %s288 = scalar_lea.sflag [#allocation5], 1
    %289 = vsyncpa %s288, 1
    %290 = vsyncpa [#allocation6], 1
    %s291 = scalar_lea.sflag [#allocation6], 1
    %292 = vsyncpa %s291, 1

</llo_original>
